<compile_context>
chip_gen: v7x
topology: tpu7x:2x2x1
jax: 0.10.0
libtpu: 0.0.40
codegen_flags: <defaults>
</compile_context>

<pallas_src>
import functools
import numpy as np
import jax
import jax.numpy as jnp
from jax.experimental import pallas as pl
from jax.experimental.pallas import tpu as pltpu


def _neg_snr_kernel(x_ref, ref_ref, cs_ref, out_ref, *,
                    lo, min_idx, max_idx, inv_denom, batch):
    x = x_ref[...]                        # (bm, Np)   bf16 signal rows
    ref = ref_ref[...]                    # (bm, 1)    int32 absolute pulse bin
    CS = cs_ref[...]                      # (Np, 2*Kbp) bf16 [cos | sin] / N

    bm = x.shape[0]
    Kbp = CS.shape[1] // 2

    # forward-normalized, band-restricted rfft: ONE single-pass bf16 MXU matmul
    XrXi = jnp.dot(x, CS, preferred_element_type=jnp.float32)    # (bm, 2*Kbp)
    Xr = XrXi[:, :Kbp]
    Xi = XrXi[:, Kbp:]
    P1 = Xr * Xr + Xi * Xi                                       # (bm, Kbp)

    # absolute frequency-bin index of each band column; one broadcast of ref
    k = jax.lax.broadcasted_iota(jnp.int32, (bm, Kbp), 1) + lo
    rel = k - ref                                                # (bm, Kbp)

    # power at the reference (pulse) bin
    pulse = jnp.sum(jnp.where(rel == 0, P1, 0.0), axis=-1, keepdims=True)

    # TODO(synk): the torch slice P1[:, min_idx:ref_idx-1] wraps around when
    # ref_idx == 0; as before we assume targets are in-band
    # (high_pass..low_pass BPM) so ref_idx is in [min_idx, max_idx].
    in_band = (k >= min_idx) & (k < max_idx)                     # static bounds
    other = jnp.sum(jnp.where(in_band & ((rel <= -2) | (rel >= 2)), P1, 0.0),
                    axis=-1, keepdims=True)
    other_avg = other * inv_denom

    # Rows beyond the true batch are zero-padded: force their ratio to 1 so
    # they contribute exactly 0 dB (no NaN from 0/0) to the partial sum.
    row = jax.lax.broadcasted_iota(jnp.int32, (bm, 1), 0) + pl.program_id(0) * bm
    pad = jnp.where(row < batch, 0.0, 1.0)
    snr = 10.0 * jnp.log10((pulse + pad) / (other_avg + pad))    # (bm, 1)

    # fused per-block reduction, written as one full lane-dense (8,128) tile
    bsum = jnp.sum(snr, axis=0, keepdims=True)                   # (1, 1)
    out_ref[...] = jnp.broadcast_to(bsum.reshape(1, 1, 1), out_ref.shape)


@functools.lru_cache(maxsize=16)
def _band_basis(N, Fs, high_pass, low_pass):
    """Band-restricted rfft basis (bf16) + band indices, cached per config."""
    K = N // 2 + 1
    f_np = np.linspace(0.0, Fs / 2.0, K).astype(np.float32)
    min_idx = int(np.argmin(np.abs(f_np - np.float32(high_pass / 60.0))))
    max_idx = int(np.argmin(np.abs(f_np - np.float32(low_pass / 60.0))))
    assert max_idx - min_idx > 3, (
        "pulse band too narrow: need more than 3 rfft bins between "
        "high_pass and low_pass")
    lo, hi = min_idx, max_idx + 1            # pulse bin may be max_idx itself
    nbins = hi - lo
    Kbp = 128 * (-(-nbins // 128))           # lane-pad band bins to 128
    Np = 128 * (-(-N // 128))                # lane-pad time axis to 128

    n = np.arange(N, dtype=np.float64)[:, None]
    kk = np.arange(lo, hi, dtype=np.float64)[None, :]
    ang = 2.0 * np.pi * n * kk / N
    CS = np.zeros((Np, 2 * Kbp), np.float32)   # padded rows/cols stay exact 0
    CS[:N, :nbins] = np.cos(ang) / N
    CS[:N, Kbp:Kbp + nbins] = -np.sin(ang) / N
    return (jnp.asarray(CS, jnp.bfloat16), jnp.asarray(f_np),
            min_idx, max_idx, lo, Kbp, Np)


def neg_snr_loss(outputs, targets, *, Fs, high_pass, low_pass):
    outputs = jnp.asarray(outputs, jnp.float32)
    targets = jnp.asarray(targets, jnp.float32)

    N = outputs.shape[-1]
    x = outputs.reshape(-1, N)
    if targets.shape[-1] != 1:
        targets = jnp.mean(targets, axis=-1, keepdims=True)
    t = (targets.reshape(-1, 1) / 60.0).astype(jnp.float32)
    B = x.shape[0]

    CS, f, min_idx, max_idx, lo, Kbp, Np = _band_basis(
        int(N), float(Fs), float(high_pass), float(low_pass))

    # per-row reference bin: cheap XLA argmin over the K rfft bins
    ref_idx = jnp.argmin(jnp.abs(f[None, :] - t), axis=-1).astype(jnp.int32)
    ref_idx = ref_idx.reshape(-1, 1)

    # Row tiling: >= 2 blocks so both v7x TensorCores get work; up to 512 rows
    # per block to amortize the ~0.35us per-step overhead on all generations.
    bm = max(8, min(512, 8 * (-(-B // 16))))
    G = max(2, -(-B // bm))
    Bp = G * bm

    x = x.astype(jnp.bfloat16)               # single-pass bf16 MXU operands
    if Np != N:
        x = jnp.pad(x, ((0, 0), (0, Np - N)))      # zero cols x zero CS rows
    if Bp != B:
        x = jnp.pad(x, ((0, Bp - B), (0, 0)))
        ref_idx = jnp.pad(ref_idx, ((0, Bp - B), (0, 0)))

    kernel = functools.partial(
        _neg_snr_kernel, lo=lo, min_idx=min_idx, max_idx=max_idx,
        inv_denom=float(1.0 / (max_idx - min_idx - 3)), batch=B)

    part = pl.pallas_call(
        kernel,
        out_shape=jax.ShapeDtypeStruct((G, 8, 128), jnp.float32),
        grid=(G,),
        in_specs=[
            pl.BlockSpec((bm, Np), lambda i: (i, 0)),       # bf16 signal rows
            pl.BlockSpec((bm, 1), lambda i: (i, 0)),        # pulse-bin indices
            pl.BlockSpec((Np, 2 * Kbp), lambda i: (0, 0)),  # basis, resident
        ],
        out_specs=pl.BlockSpec((1, 8, 128), lambda i: (i, 0, 0)),
        compiler_params=pltpu.CompilerParams(
            dimension_semantics=("parallel",),   # megacore split on v7x
            vmem_limit_bytes=32 * 1024 * 1024),
    )(x, ref_idx, CS)

    # each block already summed its rows (padded rows contribute 0)
    return -jnp.sum(part[:, 0, 0]) / B


def _ref_loss_numpy(outputs, targets, Fs, high_pass, low_pass):
    """Pure numpy re-implementation of the PyTorch forward (for checking)."""
    outputs = np.asarray(outputs, np.float64)
    targets = np.asarray(targets, np.float64)
    N = outputs.shape[-1]
    f = np.linspace(0.0, Fs / 2.0, N // 2 + 1)
    min_idx = int(np.argmin(np.abs(f - high_pass / 60.0)))
    max_idx = int(np.argmin(np.abs(f - low_pass / 60.0)))
    x = outputs.reshape(-1, N)
    t = targets
    if t.shape[-1] != 1:
        t = t.mean(-1, keepdims=True)
    t = t.reshape(-1, 1) / 60.0
    X = np.fft.rfft(x, axis=-1) / N
    P1 = X.real ** 2 + X.imag ** 2
    snrs = []
    for b in range(x.shape[0]):
        ref_idx = int(np.argmin(np.abs(f - t[b, 0])))
        pulse = P1[b, ref_idx]
        other = (P1[b, min_idx:ref_idx - 1].sum()
                 + P1[b, ref_idx + 2:max_idx].sum()) / (max_idx - min_idx - 3)
        snrs.append(10.0 * np.log10(pulse / other))
    return -np.mean(snrs)


if __name__ == "__main__":
    # module "parameters" (set deterministically in-script)
    Fs, high_pass, low_pass = 30.0, 40.0, 250.0

    key = jax.random.PRNGKey(0)
    k1, k2 = jax.random.split(key)
    B, T, N = 4, 8, 128

    # realistic rPPG-like inputs: strong in-band pulse sinusoid + noise
    bins = np.array([6, 8, 10, 12], np.float32)        # rfft bin indices
    f_hz = bins * (Fs / N)                              # exact bin frequencies
    bpm = f_hz * 60.0                                   # in 40..250 BPM band
    t_axis = np.arange(N, dtype=np.float32) / Fs
    clean = np.sin(2.0 * np.pi * f_hz[:, None] * t_axis[None, :]).astype(np.float32)
    noise = 0.1 * jax.random.normal(k1, (B, N), jnp.float32)
    outputs = jnp.asarray(clean) + noise                                  # rPPG
    jitter = 0.5 * (jax.random.uniform(k2, (B, T), jnp.float32) - 0.5)    # BPM
    targets = jnp.asarray(bpm)[:, None] + jitter

    loss = neg_snr_loss(outputs, targets,
                        Fs=Fs, high_pass=high_pass, low_pass=low_pass)
    loss = jax.block_until_ready(loss)

    ref = _ref_loss_numpy(np.asarray(outputs), np.asarray(targets),
                          Fs, high_pass, low_pass)
    assert np.isfinite(float(loss))
    assert np.allclose(float(loss), float(ref), rtol=2e-2, atol=2e-2), (
        float(loss), float(ref))
    print("KERNEL_OK")
</pallas_src>

<mosaic_0001>
module attributes {stable_mosaic.version = 11 : i64} {
  func.func @_neg_snr_kernel(%arg0: i32, %arg1: memref<8x128xbf16, #tpu.memory_space<vmem>>, %arg2: memref<8x1xi32, #tpu.memory_space<vmem>>, %arg3: memref<128x256xbf16, #tpu.memory_space<vmem>>, %arg4: memref<1x8x128xf32, #tpu.memory_space<vmem>>) attributes {dimension_semantics = [#tpu.dimension_semantics<parallel>], iteration_bounds = array<i64: 2>, scalar_prefetch = 0 : i64, scratch_operands = 0 : i64, tpu.core_type = #tpu.core_type<tc>, window_params = [{transform_indices = @transform_0, window_bounds = array<i64: 8, 128>}, {transform_indices = @transform_1, window_bounds = array<i64: 8, 1>}, {pipeline_mode = #tpu.pipeline_mode<synchronous>, transform_indices = @transform_2, window_bounds = array<i64: 128, 256>}, {transform_indices = @transform_3, window_bounds = array<i64: 1, 8, 128>}]} {
    %c0 = arith.constant 0 : index
    %c0_0 = arith.constant 0 : index
    %0 = vector.load %arg1[%c0, %c0_0] : memref<8x128xbf16, #tpu.memory_space<vmem>>, vector<8x128xbf16>
    %c0_1 = arith.constant 0 : index
    %c0_2 = arith.constant 0 : index
    %1 = vector.load %arg2[%c0_1, %c0_2] : memref<8x1xi32, #tpu.memory_space<vmem>>, vector<8x1xi32>
    %c0_3 = arith.constant 0 : index
    %c0_4 = arith.constant 0 : index
    %2 = vector.load %arg3[%c0_3, %c0_4] : memref<128x256xbf16, #tpu.memory_space<vmem>>, vector<128x256xbf16>
    %cst = arith.constant dense<0.000000e+00> : vector<8x256xf32>
    %3 = tpu.matmul %0, %2, %cst {dimension_numbers = #tpu.dot_dimension_numbers<[1], [0], [0], [1], [0, 0, 1, 1], [], []>} : vector<8x128xbf16>, vector<128x256xbf16>, vector<8x256xf32> -> vector<8x256xf32>
    %4 = vector.extract_strided_slice %3 {offsets = [0, 0], sizes = [8, 128], strides = [1, 1]} : vector<8x256xf32> to vector<8x128xf32>
    %5 = vector.extract_strided_slice %3 {offsets = [0, 128], sizes = [8, 128], strides = [1, 1]} : vector<8x256xf32> to vector<8x128xf32>
    %6 = arith.mulf %4, %4 : vector<8x128xf32>
    %7 = arith.mulf %5, %5 : vector<8x128xf32>
    %8 = arith.addf %6, %7 : vector<8x128xf32>
    %9 = tpu.iota {dimensions = array<i32: 1>} : vector<8x128xi32>
    %c3_i32 = arith.constant 3 : i32
    %10 = vector.broadcast %c3_i32 : i32 to vector<8x128xi32>
    %11 = arith.addi %9, %10 : vector<8x128xi32>
    %12 = vector.broadcast %1 : vector<8x1xi32> to vector<8x128xi32>
    %13 = arith.subi %11, %12 : vector<8x128xi32>
    %c0_i32 = arith.constant 0 : i32
    %14 = vector.broadcast %c0_i32 : i32 to vector<8x128xi32>
    %15 = arith.cmpi eq, %13, %14 : vector<8x128xi32>
    %cst_5 = arith.constant 0.000000e+00 : f32
    %16 = vector.broadcast %cst_5 : f32 to vector<8x128xf32>
    %17 = arith.select %15, %8, %16 : vector<8x128xi1>, vector<8x128xf32>
    %cst_6 = arith.constant dense<0.000000e+00> : vector<8xf32>
    %18 = vector.multi_reduction <add>, %17, %cst_6 [1] : vector<8x128xf32> to vector<8xf32>
    %19 = vector.shape_cast %18 : vector<8xf32> to vector<8x1xf32>
    %c3_i32_7 = arith.constant 3 : i32
    %20 = vector.broadcast %c3_i32_7 : i32 to vector<8x128xi32>
    %21 = arith.cmpi sge, %11, %20 : vector<8x128xi32>
    %c18_i32 = arith.constant 18 : i32
    %22 = vector.broadcast %c18_i32 : i32 to vector<8x128xi32>
    %23 = arith.cmpi slt, %11, %22 : vector<8x128xi32>
    %24 = arith.andi %21, %23 : vector<8x128xi1>
    %c-2_i32 = arith.constant -2 : i32
    %25 = vector.broadcast %c-2_i32 : i32 to vector<8x128xi32>
    %26 = arith.cmpi sle, %13, %25 : vector<8x128xi32>
    %c2_i32 = arith.constant 2 : i32
    %27 = vector.broadcast %c2_i32 : i32 to vector<8x128xi32>
    %28 = arith.cmpi sge, %13, %27 : vector<8x128xi32>
    %29 = arith.ori %26, %28 : vector<8x128xi1>
    %30 = arith.andi %24, %29 : vector<8x128xi1>
    %cst_8 = arith.constant 0.000000e+00 : f32
    %31 = vector.broadcast %cst_8 : f32 to vector<8x128xf32>
    %32 = arith.select %30, %8, %31 : vector<8x128xi1>, vector<8x128xf32>
    %cst_9 = arith.constant dense<0.000000e+00> : vector<8xf32>
    %33 = vector.multi_reduction <add>, %32, %cst_9 [1] : vector<8x128xf32> to vector<8xf32>
    %34 = vector.shape_cast %33 : vector<8xf32> to vector<8x1xf32>
    %cst_10 = arith.constant 0.0833333358 : f32
    %35 = vector.broadcast %cst_10 : f32 to vector<8x1xf32>
    %36 = arith.mulf %34, %35 : vector<8x1xf32>
    %37 = tpu.iota {dimensions = array<i32: 0>} : vector<8x1xi32>
    %c8_i32 = arith.constant 8 : i32
    %38 = arith.muli %arg0, %c8_i32 : i32
    %39 = vector.broadcast %38 : i32 to vector<8x1xi32>
    %40 = arith.addi %37, %39 : vector<8x1xi32>
    %c4_i32 = arith.constant 4 : i32
    %41 = vector.broadcast %c4_i32 : i32 to vector<8x1xi32>
    %42 = arith.cmpi slt, %40, %41 : vector<8x1xi32>
    %cst_11 = arith.constant 0.000000e+00 : f32
    %cst_12 = arith.constant 1.000000e+00 : f32
    %43 = vector.broadcast %cst_11 : f32 to vector<8x1xf32>
    %44 = vector.broadcast %cst_12 : f32 to vector<8x1xf32>
    %45 = arith.select %42, %43, %44 : vector<8x1xi1>, vector<8x1xf32>
    %46 = arith.addf %19, %45 : vector<8x1xf32>
    %47 = arith.addf %36, %45 : vector<8x1xf32>
    %48 = arith.divf %46, %47 : vector<8x1xf32>
    %49 = math.log %48 : vector<8x1xf32>
    %cst_13 = arith.constant 0.434294492 : f32
    %50 = vector.broadcast %cst_13 : f32 to vector<8x1xf32>
    %51 = arith.mulf %49, %50 : vector<8x1xf32>
    %cst_14 = arith.constant 1.000000e+01 : f32
    %52 = vector.broadcast %cst_14 : f32 to vector<8x1xf32>
    %53 = arith.mulf %52, %51 : vector<8x1xf32>
    %cst_15 = arith.constant dense<0.000000e+00> : vector<1xf32>
    %54 = vector.multi_reduction <add>, %53, %cst_15 [0] : vector<8x1xf32> to vector<1xf32>
    %55 = vector.shape_cast %54 : vector<1xf32> to vector<1x1xf32>
    %56 = vector.shape_cast %55 : vector<1x1xf32> to vector<1x1x1xf32>
    %57 = vector.shape_cast %56 : vector<1x1x1xf32> to vector<1x1x1xf32>
    %58 = vector.broadcast %57 : vector<1x1x1xf32> to vector<1x8x128xf32>
    %c0_16 = arith.constant 0 : index
    %c0_17 = arith.constant 0 : index
    %c0_18 = arith.constant 0 : index
    %59 = vector.load %arg4[%c0_16, %c0_17, %c0_18] : memref<1x8x128xf32, #tpu.memory_space<vmem>>, vector<1x8x128xf32>
    tpu.vector_store %arg4[%c0_16, %c0_17, %c0_18], %58 {strides = array<i32>} : memref<1x8x128xf32, #tpu.memory_space<vmem>>, vector<1x8x128xf32>,
    return
  }
  func.func @transform_0(%arg0: i32) -> (i32, i32) {
    %c0_i32 = arith.constant 0 : i32
    %c0_i32_0 = arith.constant 0 : i32
    return %arg0, %c0_i32 : i32, i32
  }
  func.func @transform_1(%arg0: i32) -> (i32, i32) {
    %c0_i32 = arith.constant 0 : i32
    %c0_i32_0 = arith.constant 0 : i32
    return %arg0, %c0_i32 : i32, i32
  }
  func.func @transform_2(%arg0: i32) -> (i32, i32) {
    %c0_i32 = arith.constant 0 : i32
    %c0_i32_0 = arith.constant 0 : i32
    %c0_i32_1 = arith.constant 0 : i32
    return %c0_i32, %c0_i32_0 : i32, i32
  }
  func.func @transform_3(%arg0: i32) -> (i32, i32, i32) {
    %c0_i32 = arith.constant 0 : i32
    %c0_i32_0 = arith.constant 0 : i32
    %c0_i32_1 = arith.constant 0 : i32
    return %arg0, %c0_i32, %c0_i32_0 : i32, i32, i32
  }
}

</mosaic_0001>

<llo_original>
// kernel: tpu_custom_call.1
$region0: #{tpu_custom_call.1}
  #allocation0 [shape = 'u32[]', space=smem, size = 0x4, offset = 0x4, fixed_abs, tag = 'smem constant byte address 0x4 - core index']
  #allocation1 [shape = 'u32[144,128]{1,0:T(1,128)}', space=vmem, size = 0x12000, scoped, tag = 'internal scratch']
  %s0 = inlined_call_operand.vmem [shape: bf16[16,128], index: 0, kind: input, shape index: {}]
  %s1 = inlined_call_operand.vmem [shape: s32[16,1], index: 1, kind: input, shape index: {}]
  %s2 = inlined_call_operand.hbm [shape: bf16[128,256], index: 2, kind: input, shape index: {}]
  %s3 = inlined_call_operand.hbm [shape: f32[2,8,128], index: 3, kind: output, shape index: {}]
  %s4 = sld [smem:[#allocation0]]
  $region49: #{tpu_custom_call.1} parent=0
    _
  %s6 = ssub.s32 1, %s4
  %s7 = scalar_select 0, %s6, %s4
  $region1: #{tpu_custom_call.1} parent=0
    #allocation2 [shape = 'u8[65536]{0}', space=vmem, size = 0x10000, scoped, tag = 'input window, operand 2, single buffered']
    #allocation3 [shape = 's32[2]{0}', space=sflag, size = 0x8, scoped, tag = 'scoped memory for tpu_custom_call.1']
    #allocation4 [shape = 's32[2]{0}', space=sflag, size = 0x8, scoped, tag = 'scoped memory for tpu_custom_call.1']
    #allocation5 [shape = 'u8[8192]{0}', space=vmem, size = 0x2000, scoped, tag = 'output window, operand 0']
    %8 = vsyncpa [#allocation3], 0
    %9 = vsyncpa [#allocation4], 0
    %s10 = scalar_lea.sflag [#allocation4], 1
    %11 = vsyncpa %s10, 0
    loop: start=0, step=1, limit=4
    $region2: #{tpu_custom_call.1} parent=1 // loop_pre_header
      _
    $region3: #{tpu_custom_call.1} parent=1 // loop_header
      %s13 = sphi 0, %s17
      %p14 = scmp.ge.s32.totalorder %s13, 4
      %s23 = sphi 0, %s25
      %s26 = sphi 0, %s23
      %s27 = sphi 0, %s26
      %s43 = sphi 0, %s27
      %s49 = sphi 0, %s51
      %s52 = sphi 0, %s49
      %s53 = sphi 0, %s52
      %s69 = sphi 0, %s53
      %s73 = sphi 0, %s73
      %s75 = sphi 0, %s73
      %s76 = sphi 0, %s75
      %s90 = sphi 0, %s76
      %s96 = sphi 0, %s98
      %s99 = sphi 0, %s96
      %s100 = sphi 0, %s99
      %s116 = sphi 0, %s100
    $region4: #{tpu_custom_call.1} parent=1 // loop_header_branch
      %16 = sbr.rel (%p14) target = $region8
    $region5: #{tpu_custom_call.1} parent=1 // loop_body
      %s18 = ssub.s32 %s13, 1
      %s19 = ssub.s32 %s13, 2
      %s20 = sadd.s32 %s13, 1
      %s21 = ssub.s32 %s13, %s20
      %p22 = scmp.eq.s32.totalorder %s21, 0
      %s24 = sadd.s32 %s23, 1
      %s25 = scalar_select %p22, %s23, %s24
      %p28 = pneg %p22
      %p29 = scmp.eq.s32.totalorder %s13, 1
      %p30 = por %p28, %p29
      %p31 = scmp.ne.s32.totalorder %s23, %s26
      %p32 = scmp.eq.s32.totalorder %s13, 0
      %p33 = por %p31, %p32
      %p34 = scmp.ne.s32.totalorder %s23, %s26
      %p35 = scmp.eq.s32.totalorder %s18, 1
      %p36 = por %p34, %p35
      %p37 = scmp.ne.s32.totalorder %s26, %s27
      %p38 = scmp.eq.s32.totalorder %s18, 0
      %p39 = por %p37, %p38
      %p40 = scmp.ne.s32.totalorder %s26, %s27
      %p41 = scmp.eq.s32.totalorder %s19, 1
      %p42 = por %p40, %p41
      %p44 = scmp.ne.s32.totalorder %s27, %s43
      %p45 = scmp.eq.s32.totalorder %s19, 0
      %p46 = por %p44, %p45
      %s47 = ssub.s32 %s13, %s20
      %p48 = scmp.eq.s32.totalorder %s47, 0
      %s50 = sadd.s32 %s49, 1
      %s51 = scalar_select %p48, %s49, %s50
      %p54 = pneg %p48
      %p55 = scmp.eq.s32.totalorder %s13, 1
      %p56 = por %p54, %p55
      %p57 = scmp.ne.s32.totalorder %s49, %s52
      %p58 = scmp.eq.s32.totalorder %s13, 0
      %p59 = por %p57, %p58
      %p60 = scmp.ne.s32.totalorder %s49, %s52
      %p61 = scmp.eq.s32.totalorder %s18, 1
      %p62 = por %p60, %p61
      %p63 = scmp.ne.s32.totalorder %s52, %s53
      %p64 = scmp.eq.s32.totalorder %s18, 0
      %p65 = por %p63, %p64
      %p66 = scmp.ne.s32.totalorder %s52, %s53
      %p67 = scmp.eq.s32.totalorder %s19, 1
      %p68 = por %p66, %p67
      %p70 = scmp.ne.s32.totalorder %s53, %s69
      %p71 = scmp.eq.s32.totalorder %s19, 0
      %p72 = por %p70, %p71
      %s74 = sadd.s32 %s73, 1
      %p77 = scmp.eq.s32.totalorder %s13, 1
      %p78 = scmp.ne.s32.totalorder %s73, %s75
      %p79 = scmp.eq.s32.totalorder %s13, 0
      %p80 = por %p78, %p79
      %p81 = scmp.ne.s32.totalorder %s73, %s75
      %p82 = scmp.eq.s32.totalorder %s18, 1
      %p83 = por %p81, %p82
      %p84 = scmp.ne.s32.totalorder %s75, %s76
      %p85 = scmp.eq.s32.totalorder %s18, 0
      %p86 = por %p84, %p85
      %p87 = scmp.ne.s32.totalorder %s75, %s76
      %p88 = scmp.eq.s32.totalorder %s19, 1
      %p89 = por %p87, %p88
      %p91 = scmp.ne.s32.totalorder %s76, %s90
      %p92 = scmp.eq.s32.totalorder %s19, 0
      %p93 = por %p91, %p92
      %s94 = ssub.s32 %s13, %s20
      %p95 = scmp.eq.s32.totalorder %s94, 0
      %s97 = sadd.s32 %s96, 1
      %s98 = scalar_select %p95, %s96, %s97
      %p101 = pneg %p95
      %p102 = scmp.eq.s32.totalorder %s13, 1
      %p103 = por %p101, %p102
      %p104 = scmp.ne.s32.totalorder %s96, %s99
      %p105 = scmp.eq.s32.totalorder %s13, 0
      %p106 = por %p104, %p105
      %p107 = scmp.ne.s32.totalorder %s96, %s99
      %p108 = scmp.eq.s32.totalorder %s18, 1
      %p109 = por %p107, %p108
      %p110 = scmp.ne.s32.totalorder %s99, %s100
      %p111 = scmp.eq.s32.totalorder %s18, 0
      %p112 = por %p110, %p111
      %p113 = scmp.ne.s32.totalorder %s99, %s100
      %p114 = scmp.eq.s32.totalorder %s19, 1
      %p115 = por %p113, %p114
      %p117 = scmp.ne.s32.totalorder %s100, %s116
      %p118 = scmp.eq.s32.totalorder %s19, 0
      %p119 = por %p117, %p118
      %p120 = scmp.le.s32.totalorder 1, %s13
      %p121 = scmp.lt.s32.totalorder %s13, 3
      %p122 = pnand %p120, %p121
      %p123 = pneg %p122
      // Predicated region
      $region9: #{tpu_custom_call.1} parent=5 // pred_check
        _
      $region10: #{tpu_custom_call.1} parent=5 // pred_check_branch
        %125 = sbr.rel (%p122) target = $region12
      $region11: #{tpu_custom_call.1} parent=5 // pred_region
        %s126 = ssub.s32 %s13, 1
        // Predicated region
        $region13: #{tpu_custom_call.1} parent=11 // pred_check
          %p127 = pneg %p86
        $region14: #{tpu_custom_call.1} parent=11 // pred_check_branch
          %129 = sbr.rel (%p127) target = $region16
        $region15: #{tpu_custom_call.1} parent=11 // pred_region
          %s131 = ssub.s32 2048, 2048
          %132 = vsyncadd [#allocation3], %s131
          %s133 = sshll.u32 [#allocation2], 4
          %s134 = int_to_ptr.vmem [resolvable:$true] %s133
          %139 = dma.hbm_to_vmem [thread:$0]  %s2, 2048, %s134, [#allocation3], 128, 128, 8
        $region16: #{tpu_custom_call.1} parent=11 // pred_fallthru
          _
      $region12: #{tpu_custom_call.1} parent=5 // pred_fallthru
        _
      %p140 = scmp.lt.s32.totalorder %s13, 2
      // Predicated region
      $region17: #{tpu_custom_call.1} parent=5 // pred_check
        %p141 = pneg %p140
      $region18: #{tpu_custom_call.1} parent=5 // pred_check_branch
        %143 = sbr.rel (%p141) target = $region20
      $region19: #{tpu_custom_call.1} parent=5 // pred_region
        // Predicated region
        $region21: #{tpu_custom_call.1} parent=19 // pred_check
          %p144 = pneg %p33
        $region22: #{tpu_custom_call.1} parent=19 // pred_check_branch
          %146 = sbr.rel (%p144) target = $region24
        $region23: #{tpu_custom_call.1} parent=19 // pred_region
          %p147 = scmp.lt.s32.totalorder %s13, 1
          %s148 = scalar_select %p147, %s13, 1
          %s149 = smul.addr %s148, 4
          %s150 = scalar_lea.vmem %s0, %s149
        $region24: #{tpu_custom_call.1} parent=19 // pred_fallthru
          _
        // Predicated region
        $region25: #{tpu_custom_call.1} parent=19 // pred_check
          %p151 = pneg %p59
        $region26: #{tpu_custom_call.1} parent=19 // pred_check_branch
          %153 = sbr.rel (%p151) target = $region28
        $region27: #{tpu_custom_call.1} parent=19 // pred_region
          %p154 = scmp.lt.s32.totalorder %s13, 1
          %s155 = scalar_select %p154, %s13, 1
          %s156 = smul.addr %s155, 8
          %s157 = scalar_lea.vmem %s1, %s156
        $region28: #{tpu_custom_call.1} parent=19 // pred_fallthru
          _
      $region20: #{tpu_custom_call.1} parent=5 // pred_fallthru
        _
      %p158 = scmp.le.s32.totalorder 1, %s13
      %p159 = scmp.lt.s32.totalorder %s13, 3
      %p160 = pnand %p158, %p159
      %p161 = pneg %p160
      // Predicated region
      $region29: #{tpu_custom_call.1} parent=5 // pred_check
        _
      $region30: #{tpu_custom_call.1} parent=5 // pred_check_branch
        %163 = sbr.rel (%p160) target = $region32
      $region31: #{tpu_custom_call.1} parent=5 // pred_region
        %s164 = ssub.s32 %s13, 1
        // Predicated region
        $region33: #{tpu_custom_call.1} parent=31 // pred_check
          %p165 = pneg %p86
        $region34: #{tpu_custom_call.1} parent=31 // pred_check_branch
          %167 = sbr.rel (%p165) target = $region36
        $region35: #{tpu_custom_call.1} parent=31 // pred_region
          %168 = dma.done [#allocation3], 2048
        $region36: #{tpu_custom_call.1} parent=31 // pred_fallthru
          _
        %p169 = scmp.lt.s32.totalorder %s18, 1
        %s170 = scalar_select %p169, %s18, 1
        %s171 = smul.addr %s170, 4
        %s172 = scalar_lea.vmem %s0, %s171
        %p173 = pneg %p39
        %p174 = pneg %p36
        %p175 = scmp.lt.s32.totalorder %s18, 1
        %s176 = scalar_select %p175, %s18, 1
        %s177 = smul.addr %s176, 8
        %s178 = scalar_lea.vmem %s1, %s177
        %p179 = pneg %p65
        %p180 = pneg %p62
        %p181 = pneg %p86
        %p182 = pneg %p83
        %p183 = pneg %p112
        %p184 = pneg %p109
        %s185 = sand.u32 %s99, 1
        %s186 = scalar_lea.sflag [#allocation4], %s185
        %s187 = sand.u32 %s99, 1
        %s188 = smul.addr %s187, 8
        %s189 = scalar_lea.vmem [#allocation5], %s188
        %p190 = scmp.lt.s32.totalorder %s18, 1
        %s191 = scalar_select %p190, %s18, 1
        %s192 = smul.addr %s191, 4
        %s193 = scalar_lea.vmem %s0, %s192
        %p194 = scmp.lt.s32.totalorder %s18, 1
        %s195 = scalar_select %p194, %s18, 1
        %s196 = smul.addr %s195, 8
        %s197 = scalar_lea.vmem %s1, %s196
        %v199 = vld [vmem:[%s193] sm:$0xf]
        %v200 = vld [vmem:[%s197] sm:$0xff]
        %v201 = vld [vmem:[#allocation2] sm:$0xff]
        %v202 = vld [vmem:[#allocation2 + $0x8] sm:$0xff]
        %v203 = vld [vmem:[#allocation2 + $0x10] sm:$0xff]
        %v204 = vld [vmem:[#allocation2 + $0x18] sm:$0xff]
        %v205 = vld [vmem:[#allocation2 + $0x20] sm:$0xff]
        %v206 = vld [vmem:[#allocation2 + $0x28] sm:$0xff]
        %v207 = vld [vmem:[#allocation2 + $0x30] sm:$0xff]
        %v208 = vld [vmem:[#allocation2 + $0x38] sm:$0xff]
        %v209 = vld [vmem:[#allocation2 + $0x40] sm:$0xff]
        %v210 = vld [vmem:[#allocation2 + $0x48] sm:$0xff]
        %v211 = vld [vmem:[#allocation2 + $0x50] sm:$0xff]
        %v212 = vld [vmem:[#allocation2 + $0x58] sm:$0xff]
        %v213 = vld [vmem:[#allocation2 + $0x60] sm:$0xff]
        %v214 = vld [vmem:[#allocation2 + $0x68] sm:$0xff]
        %v215 = vld [vmem:[#allocation2 + $0x70] sm:$0xff]
        %v216 = vld [vmem:[#allocation2 + $0x78] sm:$0xff]
        %v233 = vunpack.c.l.b16 %v201
        %v234 = vunpack.c.h.b16 %v201
        %v235 = vunpack.c.l.b16 %v202
        %v236 = vunpack.c.h.b16 %v202
        %v237 = vunpack.c.l.b16 %v203
        %v238 = vunpack.c.h.b16 %v203
        %v239 = vunpack.c.l.b16 %v204
        %v240 = vunpack.c.h.b16 %v204
        %v241 = vunpack.c.l.b16 %v205
        %v242 = vunpack.c.h.b16 %v205
        %v243 = vunpack.c.l.b16 %v206
        %v244 = vunpack.c.h.b16 %v206
        %v245 = vunpack.c.l.b16 %v207
        %v246 = vunpack.c.h.b16 %v207
        %v247 = vunpack.c.l.b16 %v208
        %v248 = vunpack.c.h.b16 %v208
        %v249 = vunpack.c.l.b16 %v209
        %v250 = vunpack.c.h.b16 %v209
        %v251 = vunpack.c.l.b16 %v210
        %v252 = vunpack.c.h.b16 %v210
        %v253 = vunpack.c.l.b16 %v211
        %v254 = vunpack.c.h.b16 %v211
        %v255 = vunpack.c.l.b16 %v212
        %v256 = vunpack.c.h.b16 %v212
        %v257 = vunpack.c.l.b16 %v213
        %v258 = vunpack.c.h.b16 %v213
        %v259 = vunpack.c.l.b16 %v214
        %v260 = vunpack.c.h.b16 %v214
        %v261 = vunpack.c.l.b16 %v215
        %v262 = vunpack.c.h.b16 %v215
        %v263 = vunpack.c.l.b16 %v216
        %v264 = vunpack.c.h.b16 %v216
        %v265 = vpack.c.b16 %v235, %v233
        %v266 = vpack.c.b16 %v236, %v234
        %v267 = vpack.c.b16 %v239, %v237
        %v268 = vpack.c.b16 %v240, %v238
        %v269 = vpack.c.b16 %v243, %v241
        %v270 = vpack.c.b16 %v244, %v242
        %v271 = vpack.c.b16 %v247, %v245
        %v272 = vpack.c.b16 %v248, %v246
        %v273 = vpack.c.b16 %v251, %v249
        %v274 = vpack.c.b16 %v252, %v250
        %v275 = vpack.c.b16 %v255, %v253
        %v276 = vpack.c.b16 %v256, %v254
        %v277 = vpack.c.b16 %v259, %v257
        %v278 = vpack.c.b16 %v260, %v258
        %v279 = vpack.c.b16 %v263, %v261
        %v280 = vpack.c.b16 %v264, %v262
        %297 = vmatprep.subr.bf16.mxu0 %v266
        %298 = vmatpush1.bf16.msra.mxu0 %v265
        %299 = vmatprep.subr.bf16.mxu0 %v268
        %300 = vmatpush1.bf16.msra.mxu0 %v267
        %301 = vmatprep.subr.bf16.mxu0 %v270
        %302 = vmatpush1.bf16.msra.mxu0 %v269
        %303 = vmatprep.subr.bf16.mxu0 %v272
        %304 = vmatpush1.bf16.msra.mxu0 %v271
        %305 = vmatprep.subr.bf16.mxu0 %v274
        %306 = vmatpush1.bf16.msra.mxu0 %v273
        %307 = vmatprep.subr.bf16.mxu0 %v276
        %308 = vmatpush1.bf16.msra.mxu0 %v275
        %309 = vmatprep.subr.bf16.mxu0 %v278
        %310 = vmatpush1.bf16.msra.mxu0 %v277
        %311 = vmatprep.subr.bf16.mxu0 %v280
        %312 = vmatpush1.bf16.msra.mxu0 %v279
        %313 = vmatprep.subr.bf16.mxu0 0
        %314 = vmatpush1.bf16.msra.mxu0 0
        %315 = vmatprep.subr.bf16.mxu0 0
        %316 = vmatpush1.bf16.msra.mxu0 0
        %317 = vmatprep.subr.bf16.mxu0 0
        %318 = vmatpush1.bf16.msra.mxu0 0
        %319 = vmatprep.subr.bf16.mxu0 0
        %320 = vmatpush1.bf16.msra.mxu0 0
        %321 = vmatprep.subr.bf16.mxu0 0
        %322 = vmatpush1.bf16.msra.mxu0 0
        %323 = vmatprep.subr.bf16.mxu0 0
        %324 = vmatpush1.bf16.msra.mxu0 0
        %325 = vmatprep.subr.bf16.mxu0 0
        %326 = vmatpush1.bf16.msra.mxu0 0
        %327 = vmatprep.subr.bf16.mxu0 0
        %328 = vmatpush1.bf16.msra.mxu0 0
        %329 = vmatprep.mubr.bf16.mxu0 0
        %330 = vmatmul.mubr.bf16.gmra.mrb[0].mxu0 %v199
        %v331 = vpop.f32.mrb[0].mxu0
        %v332 = vadd.f32 0.0, %v331
        %v333 = vpop.f32.mrb[0].mxu0
        %v334 = vadd.f32 0.0, %v333
        %v335 = vpop.f32.mrb[0].mxu0
        %v336 = vpop.f32.mrb[0].mxu0
        %337 = vdwg.mxu0
        %v338 = vmul.f32 %v332, %v332
        %v339 = vmul.f32 %v334, %v334
        %v340 = vadd.f32 %v338, %v339
        %v341 = vlaneseq
        %v342 = vand.u32 %v341, 127
        %v343 = vadd.s32 %v342, 3
        %344 = vset.pattern.permute.xlu0 0
        %345 = vperm.xlu0 %344, %v200
        %v346 = vpop.permute.xlu0 %345
        %v347 = vsub.s32 %v343, %v346
        %vm348 = vcmp.eq.s32.totalorder %v347, 0
        %v349 = vsel %vm348, %v340, 0.0
        %350 = vadd.xlane.f32.xlu0 %v349
        %v351 = vpop.xlane.xlu0 %350
        %vm352 = vcmp.ge.s32.totalorder %v343, 3
        %vm353 = vcmp.lt.s32.totalorder %v343, 18
        %vm354 = vmand %vm352, %vm353
        %vm355 = vcmp.le.s32.totalorder %v347, 4294967294
        %vm356 = vcmp.ge.s32.totalorder %v347, 2
        %vm357 = vmor %vm355, %vm356
        %vm358 = vmand %vm354, %vm357
        %v359 = vsel %vm358, %v340, 0.0
        %360 = vadd.xlane.f32.xlu0 %v359
        %v361 = vpop.xlane.xlu0 %360
        %v362 = vmul.f32 %v361, 0.083333336
        %v363 = vlaneseq
        %v364 = vshrl.u32 %v363, 7
        %s365 = smul.u32 %s18, 8
        %v366 = vstv %s365
        %v367 = vadd.s32 %v364, %v366
        %vm368 = vcmp.lt.s32.totalorder %v367, 4
        %v369 = vsel %vm368, 0.0, 1.0
        %v370 = vadd.f32 %v351, %v369
        %v371 = vadd.f32 %v362, %v369
        %v372 = vrcp.pop %v371
        %v373 = vmul.f32 %v370, %v372
        %v374 = vlog2.pop %v373
        %v375 = vmul.f32 %v374, 0.6931472
        %v376 = vmul.f32 %v375, 0.4342945
        %v377 = vmul.f32 %v376, 10.0
        %v378 = vrot.slane %v377, 4
        %v379 = vadd.f32 %v377, %v378
        %v380 = vrot.slane %v379, 2
        %v381 = vadd.f32 %v379, %v380
        %v382 = vrot.slane %v381, 1
        %v383 = vadd.f32 %v381, %v382
        %384 = vst [vmem:[%s189] sm:$0xff] %v383
        %s385 = sand.u32 %s99, 1
        %s386 = scalar_lea.sflag [#allocation4], %s385
        %s387 = sand.u32 %s99, 1
        %s388 = smul.addr %s387, 8
        %s389 = scalar_lea.vmem [#allocation5], %s388
        // Predicated region
        $region37: #{tpu_custom_call.1} parent=31 // pred_check
          %p390 = pneg %p109
        $region38: #{tpu_custom_call.1} parent=31 // pred_check_branch
          %392 = sbr.rel (%p390) target = $region40
        $region39: #{tpu_custom_call.1} parent=31 // pred_region
          %s394 = ssub.s32 128, 128
          %395 = vsyncadd %s386, %s394
          %s396 = smul.addr %s18, 128
          %s397 = scalar_lea.hbm %s3, %s396
          %s399 = sshll.u32 %s389, 4
          %s400 = int_to_ptr.vmem [resolvable:$true] %s399
          %402 = dma.vmem_to_hbm [thread:$0]  %s400, 128, %s397, %s386
        $region40: #{tpu_custom_call.1} parent=31 // pred_fallthru
          _
      $region32: #{tpu_custom_call.1} parent=5 // pred_fallthru
        _
      %p403 = scmp.le.s32.totalorder 2, %s13
      // Predicated region
      $region41: #{tpu_custom_call.1} parent=5 // pred_check
        %p404 = pneg %p403
      $region42: #{tpu_custom_call.1} parent=5 // pred_check_branch
        %406 = sbr.rel (%p404) target = $region44
      $region43: #{tpu_custom_call.1} parent=5 // pred_region
        %s407 = ssub.s32 %s13, 2
        // Predicated region
        $region45: #{tpu_custom_call.1} parent=43 // pred_check
          %p408 = pneg %p115
        $region46: #{tpu_custom_call.1} parent=43 // pred_check_branch
          %410 = sbr.rel (%p408) target = $region48
        $region47: #{tpu_custom_call.1} parent=43 // pred_region
          %s411 = sand.u32 %s100, 1
          %s412 = scalar_lea.sflag [#allocation4], %s411
          %s413 = sand.u32 %s100, 1
          %s414 = smul.addr %s413, 8
          %s415 = scalar_lea.vmem [#allocation5], %s414
          %416 = dma.done %s412, 128
        $region48: #{tpu_custom_call.1} parent=43 // pred_fallthru
          _
      $region44: #{tpu_custom_call.1} parent=5 // pred_fallthru
        _
    $region6: #{tpu_custom_call.1} parent=1 // loop_footer
      %s17 = sadd.s32 1, %s13
    $region7: #{tpu_custom_call.1} parent=1 // loop_footer_branch
      %12 = sbr.rel target = $region3
    $region8: #{tpu_custom_call.1} parent=1 // loop_exit
      _
    %417 = vsyncpa [#allocation3], 1
    %s418 = scalar_lea.sflag [#allocation3], 1
    %419 = vsyncpa %s418, 1
    %420 = vsyncpa [#allocation4], 1
    %s421 = scalar_lea.sflag [#allocation4], 1
    %422 = vsyncpa %s421, 1

</llo_original>
